<compile_context>
chip_gen: v6e
topology: v6e:2x2x1
jax: 0.10.0
libtpu: 0.0.40
codegen_flags: <defaults>
</compile_context>

<pallas_src>
import jax
import jax.numpy as jnp
from jax.experimental import pallas as pl
from jax.experimental.pallas import tpu as pltpu

HIDDEN = 128
MAX_TB = 1024  # max batch rows per grid step


def _round_up(x, m):
    return ((x + m - 1) // m) * m


def critic_kernel(s_ref, a_ref, ws_ref, wa_ref, b1_ref, wq_ref, bq_ref, q_ref):
    # fc1 over [state | action], written as two dots against the split weight.
    h = jnp.dot(s_ref[...], ws_ref[...], preferred_element_type=jnp.float32)
    h = h + jnp.dot(a_ref[...], wa_ref[...], preferred_element_type=jnp.float32)
    h = jnp.maximum(h + b1_ref[...], 0.0)
    # value head: 128 -> 1 (output is inherently 1 lane wide for the Critic)
    q_ref[...] = jnp.dot(h, wq_ref[...], preferred_element_type=jnp.float32) + bq_ref[...]


def critic_forward(state, action, params):
    """state (B, S) f32, action (B, A) f32 -> q (B, 1) f32."""
    w1, b1, wq, bq = params
    B, S = state.shape
    A = action.shape[1]
    assert w1.shape == (S + A, HIDDEN), (w1.shape, S, A)

    # Split the fc1 weight so the kernel never needs a materialized concat.
    ws, wa = w1[:S], w1[S:]

    # Tile the batch; pad it up to a multiple of the (8-aligned) tile.
    TB = min(MAX_TB, _round_up(max(B, 1), 8))
    padded_B = _round_up(B, TB)
    if padded_B != B:
        state = jnp.pad(state, ((0, padded_B - B), (0, 0)))
        action = jnp.pad(action, ((0, padded_B - B), (0, 0)))

    grid = (padded_B // TB,)

    def const(shape):
        # Weights/biases: same block every grid step -> stay VMEM-resident.
        return pl.BlockSpec(shape, lambda i: (0,) * len(shape))

    q = pl.pallas_call(
        critic_kernel,
        out_shape=jax.ShapeDtypeStruct((padded_B, 1), jnp.float32),
        grid=grid,
        in_specs=[
            pl.BlockSpec((TB, S), lambda i: (i, 0)),   # state tile (pipelined)
            pl.BlockSpec((TB, A), lambda i: (i, 0)),   # action tile (pipelined)
            const(ws.shape), const(wa.shape), const(b1.shape),
            const(wq.shape), const(bq.shape),
        ],
        out_specs=pl.BlockSpec((TB, 1), lambda i: (i, 0)),
        compiler_params=pltpu.CompilerParams(
            dimension_semantics=("parallel",)),        # v7x: shard batch over 2 TCs
    )(state, action, ws, wa, b1, wq, bq)
    return q[:B]


def critic_module_forward(state, action, params):
    """Mirrors Critic.forward exactly: action.view(1,-1), empty-tensor fallbacks,
    then concat + fc1 + relu + q via the Pallas kernel."""
    action = action.reshape(1, -1)
    if action.size == 0:                      # torch: action = [[0, 0]]
        action = jnp.zeros((1, 2), dtype=action.dtype)
    if state.size == 0:                       # torch: state = [[0]*14]
        state = jnp.zeros((1, 14), dtype=state.dtype)
    return critic_forward(state, action, params)


def init_params(key, state_size, action_size, hidden=HIDDEN):
    """Deterministic init mimicking torch.nn.Linear default U(-1/sqrt(fan_in), +)."""
    def linear(k, fan_in, fan_out):
        kw, kb = jax.random.split(k)
        bound = 1.0 / jnp.sqrt(float(fan_in))
        w = jax.random.uniform(kw, (fan_in, fan_out), jnp.float32, -bound, bound)
        b = jax.random.uniform(kb, (1, fan_out), jnp.float32, -bound, bound)
        return w, b

    k1, k2 = jax.random.split(key)
    w1, b1 = linear(k1, state_size + action_size, hidden)
    wq, bq = linear(k2, hidden, 1)
    return (w1, b1, wq, bq)


if __name__ == "__main__":
    key = jax.random.PRNGKey(0)
    kp, ks, ka = jax.random.split(key, 3)

    state_size, action_size, batch = 14, 2, 8
    params = init_params(kp, state_size, action_size)
    w1, b1, wq, bq = params

    # --- batched kernel path ---
    state = jax.random.normal(ks, (batch, state_size), jnp.float32)
    action = jax.random.normal(ka, (batch, action_size), jnp.float32)
    q = jax.block_until_ready(critic_forward(state, action, params))

    sa = jnp.concatenate([state, action], axis=1)
    q_ref = jnp.maximum(sa @ w1 + b1, 0.0) @ wq + bq
    assert q.shape == (batch, 1)
    assert jnp.allclose(q, q_ref, atol=1e-4, rtol=1e-4), "q mismatch (batched)"

    # --- exact module semantics: action.view(1, -1), batch 1 ---
    s1 = jax.random.normal(jax.random.PRNGKey(1), (1, state_size), jnp.float32)
    a1 = jax.random.normal(jax.random.PRNGKey(2), (action_size,), jnp.float32)
    q1 = jax.block_until_ready(critic_module_forward(s1, a1, params))
    sa1 = jnp.concatenate([s1, a1.reshape(1, -1)], axis=1)
    q1_ref = jnp.maximum(sa1 @ w1 + b1, 0.0) @ wq + bq
    assert q1.shape == (1, 1)
    assert jnp.allclose(q1, q1_ref, atol=1e-4, rtol=1e-4), "q mismatch (module path)"

    # --- empty-input fallback branch from the PyTorch module ---
    q_empty = jax.block_until_ready(
        critic_module_forward(jnp.zeros((0, state_size), jnp.float32),
                              jnp.zeros((0,), jnp.float32), params))
    sa0 = jnp.zeros((1, state_size + action_size), jnp.float32)
    q_empty_ref = jnp.maximum(sa0 @ w1 + b1, 0.0) @ wq + bq
    assert jnp.allclose(q_empty, q_empty_ref, atol=1e-4, rtol=1e-4), "q mismatch (empty path)"

    print("KERNEL_OK")
</pallas_src>

<mosaic_0001>
module attributes {stable_mosaic.version = 11 : i64} {
  func.func @critic_kernel(%arg0: i32, %arg1: memref<8x14xf32, #tpu.memory_space<vmem>>, %arg2: memref<8x2xf32, #tpu.memory_space<vmem>>, %arg3: memref<14x128xf32, #tpu.memory_space<vmem>>, %arg4: memref<2x128xf32, #tpu.memory_space<vmem>>, %arg5: memref<1x128xf32, #tpu.memory_space<vmem>>, %arg6: memref<128x1xf32, #tpu.memory_space<vmem>>, %arg7: memref<1x1xf32, #tpu.memory_space<vmem>>, %arg8: memref<8x1xf32, #tpu.memory_space<vmem>>) attributes {dimension_semantics = [#tpu.dimension_semantics<parallel>], iteration_bounds = array<i64: 1>, scalar_prefetch = 0 : i64, scratch_operands = 0 : i64, tpu.core_type = #tpu.core_type<tc>, window_params = [{transform_indices = @transform_0, window_bounds = array<i64: 8, 14>}, {transform_indices = @transform_1, window_bounds = array<i64: 8, 2>}, {pipeline_mode = #tpu.pipeline_mode<synchronous>, transform_indices = @transform_2, window_bounds = array<i64: 14, 128>}, {pipeline_mode = #tpu.pipeline_mode<synchronous>, transform_indices = @transform_3, window_bounds = array<i64: 2, 128>}, {pipeline_mode = #tpu.pipeline_mode<synchronous>, transform_indices = @transform_4, window_bounds = array<i64: 1, 128>}, {pipeline_mode = #tpu.pipeline_mode<synchronous>, transform_indices = @transform_5, window_bounds = array<i64: 128, 1>}, {pipeline_mode = #tpu.pipeline_mode<synchronous>, transform_indices = @transform_6, window_bounds = array<i64: 1, 1>}, {transform_indices = @transform_7, window_bounds = array<i64: 8, 1>}]} {
    %c0 = arith.constant 0 : index
    %c0_0 = arith.constant 0 : index
    %0 = vector.load %arg1[%c0, %c0_0] : memref<8x14xf32, #tpu.memory_space<vmem>>, vector<8x14xf32>
    %c0_1 = arith.constant 0 : index
    %c0_2 = arith.constant 0 : index
    %1 = vector.load %arg3[%c0_1, %c0_2] : memref<14x128xf32, #tpu.memory_space<vmem>>, vector<14x128xf32>
    %cst = arith.constant dense<0.000000e+00> : vector<8x128xf32>
    %2 = tpu.matmul %0, %1, %cst {dimension_numbers = #tpu.dot_dimension_numbers<[1], [0], [0], [1], [0, 0, 1, 1], [], []>} : vector<8x14xf32>, vector<14x128xf32>, vector<8x128xf32> -> vector<8x128xf32>
    %c0_3 = arith.constant 0 : index
    %c0_4 = arith.constant 0 : index
    %3 = vector.load %arg2[%c0_3, %c0_4] : memref<8x2xf32, #tpu.memory_space<vmem>>, vector<8x2xf32>
    %c0_5 = arith.constant 0 : index
    %c0_6 = arith.constant 0 : index
    %4 = vector.load %arg4[%c0_5, %c0_6] : memref<2x128xf32, #tpu.memory_space<vmem>>, vector<2x128xf32>
    %cst_7 = arith.constant dense<0.000000e+00> : vector<8x128xf32>
    %5 = tpu.matmul %3, %4, %cst_7 {dimension_numbers = #tpu.dot_dimension_numbers<[1], [0], [0], [1], [0, 0, 1, 1], [], []>} : vector<8x2xf32>, vector<2x128xf32>, vector<8x128xf32> -> vector<8x128xf32>
    %6 = arith.addf %2, %5 : vector<8x128xf32>
    %c0_8 = arith.constant 0 : index
    %c0_9 = arith.constant 0 : index
    %7 = vector.load %arg5[%c0_8, %c0_9] : memref<1x128xf32, #tpu.memory_space<vmem>>, vector<1x128xf32>
    %8 = vector.broadcast %7 : vector<1x128xf32> to vector<8x128xf32>
    %9 = arith.addf %6, %8 : vector<8x128xf32>
    %cst_10 = arith.constant 0.000000e+00 : f32
    %10 = vector.broadcast %cst_10 : f32 to vector<8x128xf32>
    %11 = arith.maximumf %9, %10 : vector<8x128xf32>
    %c0_11 = arith.constant 0 : index
    %c0_12 = arith.constant 0 : index
    %12 = vector.load %arg6[%c0_11, %c0_12] : memref<128x1xf32, #tpu.memory_space<vmem>>, vector<128x1xf32>
    %cst_13 = arith.constant dense<0.000000e+00> : vector<8x1xf32>
    %13 = tpu.matmul %11, %12, %cst_13 {dimension_numbers = #tpu.dot_dimension_numbers<[1], [0], [0], [1], [0, 0, 1, 1], [], []>} : vector<8x128xf32>, vector<128x1xf32>, vector<8x1xf32> -> vector<8x1xf32>
    %c0_14 = arith.constant 0 : index
    %c0_15 = arith.constant 0 : index
    %14 = vector.load %arg7[%c0_14, %c0_15] : memref<1x1xf32, #tpu.memory_space<vmem>>, vector<1x1xf32>
    %15 = vector.broadcast %14 : vector<1x1xf32> to vector<8x1xf32>
    %16 = arith.addf %13, %15 : vector<8x1xf32>
    %c0_16 = arith.constant 0 : index
    %c0_17 = arith.constant 0 : index
    %17 = vector.load %arg8[%c0_16, %c0_17] : memref<8x1xf32, #tpu.memory_space<vmem>>, vector<8x1xf32>
    tpu.vector_store %arg8[%c0_16, %c0_17], %16 {strides = array<i32>} : memref<8x1xf32, #tpu.memory_space<vmem>>, vector<8x1xf32>,
    return
  }
  func.func @transform_0(%arg0: i32) -> (i32, i32) {
    %c0_i32 = arith.constant 0 : i32
    %c0_i32_0 = arith.constant 0 : i32
    return %arg0, %c0_i32 : i32, i32
  }
  func.func @transform_1(%arg0: i32) -> (i32, i32) {
    %c0_i32 = arith.constant 0 : i32
    %c0_i32_0 = arith.constant 0 : i32
    return %arg0, %c0_i32 : i32, i32
  }
  func.func @transform_2(%arg0: i32) -> (i32, i32) {
    %c0_i32 = arith.constant 0 : i32
    %c0_i32_0 = arith.constant 0 : i32
    %c0_i32_1 = arith.constant 0 : i32
    return %c0_i32, %c0_i32_0 : i32, i32
  }
  func.func @transform_3(%arg0: i32) -> (i32, i32) {
    %c0_i32 = arith.constant 0 : i32
    %c0_i32_0 = arith.constant 0 : i32
    %c0_i32_1 = arith.constant 0 : i32
    return %c0_i32, %c0_i32_0 : i32, i32
  }
  func.func @transform_4(%arg0: i32) -> (i32, i32) {
    %c0_i32 = arith.constant 0 : i32
    %c0_i32_0 = arith.constant 0 : i32
    %c0_i32_1 = arith.constant 0 : i32
    return %c0_i32, %c0_i32_0 : i32, i32
  }
  func.func @transform_5(%arg0: i32) -> (i32, i32) {
    %c0_i32 = arith.constant 0 : i32
    %c0_i32_0 = arith.constant 0 : i32
    %c0_i32_1 = arith.constant 0 : i32
    return %c0_i32, %c0_i32_0 : i32, i32
  }
  func.func @transform_6(%arg0: i32) -> (i32, i32) {
    %c0_i32 = arith.constant 0 : i32
    %c0_i32_0 = arith.constant 0 : i32
    %c0_i32_1 = arith.constant 0 : i32
    return %c0_i32, %c0_i32_0 : i32, i32
  }
  func.func @transform_7(%arg0: i32) -> (i32, i32) {
    %c0_i32 = arith.constant 0 : i32
    %c0_i32_0 = arith.constant 0 : i32
    return %arg0, %c0_i32 : i32, i32
  }
}

</mosaic_0001>

<llo_original>
// kernel: tpu_custom_call.1
$region0: #{tpu_custom_call.1}
  #allocation0 [shape = 'u32[]', space=smem, size = 0x4, offset = 0x4, fixed_abs, tag = 'smem constant byte address 0x4 - core index']
  #allocation1 [shape = 'u32[144,128]{1,0:T(1,128)}', space=vmem, size = 0x12000, scoped, tag = 'internal scratch']
  #allocation2 [shape = 'f32[1,1]{1,0:T(1,128)S(1)}', space=vmem, size = 0x200, scoped, tag = 'scoped memory for tpu_custom_call.1']
  %s0 = inlined_call_operand.vmem [shape: f32[8,14], index: 0, kind: input, shape index: {}]
  %s1 = inlined_call_operand.vmem [shape: f32[8,2], index: 1, kind: input, shape index: {}]
  %s2 = inlined_call_operand.vmem [shape: f32[14,128], index: 2, kind: input, shape index: {}]
  %s3 = inlined_call_operand.vmem [shape: f32[2,128], index: 3, kind: input, shape index: {}]
  %s4 = inlined_call_operand.vmem [shape: f32[1,128], index: 4, kind: input, shape index: {}]
  %s5 = inlined_call_operand.vmem [shape: f32[128,1], index: 5, kind: input, shape index: {}]
  %s6 = inlined_call_operand.<no memory space> [shape: f32[1,1], index: 6, kind: input, shape index: {}]
  %s7 = inlined_call_operand.vmem [shape: f32[8,1], index: 7, kind: output, shape index: {}]
  %s8 = sld [smem:[#allocation0]]
  $region38: #{tpu_custom_call.1} parent=0
    _
  %s10 = ssub.s32 1, %s8
  %s11 = scalar_select 0, %s10, %s8
  %v12 = vstv %s6
  %13 = vst [vmem:[#allocation2] sm:$0x1] %v12
  // Predicated region
  $region2: #{tpu_custom_call.1} parent=0 // pred_check
    _
  $region3: #{tpu_custom_call.1} parent=0 // pred_check_branch
    %15 = sbr.rel (0) target = $region5
  $region4: #{tpu_custom_call.1} parent=0 // pred_region
    _
  $region5: #{tpu_custom_call.1} parent=0 // pred_fallthru
    _
  // Predicated region
  $region6: #{tpu_custom_call.1} parent=0 // pred_check
    _
  $region7: #{tpu_custom_call.1} parent=0 // pred_check_branch
    %17 = sbr.rel (0) target = $region9
  $region8: #{tpu_custom_call.1} parent=0 // pred_region
    _
  $region9: #{tpu_custom_call.1} parent=0 // pred_fallthru
    _
  // Predicated region
  $region10: #{tpu_custom_call.1} parent=0 // pred_check
    _
  $region11: #{tpu_custom_call.1} parent=0 // pred_check_branch
    %19 = sbr.rel (0) target = $region13
  $region12: #{tpu_custom_call.1} parent=0 // pred_region
    _
  $region13: #{tpu_custom_call.1} parent=0 // pred_fallthru
    _
  // Predicated region
  $region14: #{tpu_custom_call.1} parent=0 // pred_check
    _
  $region15: #{tpu_custom_call.1} parent=0 // pred_check_branch
    %21 = sbr.rel (0) target = $region17
  $region16: #{tpu_custom_call.1} parent=0 // pred_region
    _
  $region17: #{tpu_custom_call.1} parent=0 // pred_fallthru
    _
  // Predicated region
  $region18: #{tpu_custom_call.1} parent=0 // pred_check
    _
  $region19: #{tpu_custom_call.1} parent=0 // pred_check_branch
    %23 = sbr.rel (0) target = $region21
  $region20: #{tpu_custom_call.1} parent=0 // pred_region
    _
  $region21: #{tpu_custom_call.1} parent=0 // pred_fallthru
    _
  // Predicated region
  $region22: #{tpu_custom_call.1} parent=0 // pred_check
    _
  $region23: #{tpu_custom_call.1} parent=0 // pred_check_branch
    %25 = sbr.rel (0) target = $region25
  $region24: #{tpu_custom_call.1} parent=0 // pred_region
    _
  $region25: #{tpu_custom_call.1} parent=0 // pred_fallthru
    _
  // Predicated region
  $region26: #{tpu_custom_call.1} parent=0 // pred_check
    _
  $region27: #{tpu_custom_call.1} parent=0 // pred_check_branch
    %27 = sbr.rel (0) target = $region29
  $region28: #{tpu_custom_call.1} parent=0 // pred_region
    _
  $region29: #{tpu_custom_call.1} parent=0 // pred_fallthru
    _
  %v28 = vld [vmem:[%s0] sm:$0xff]
  %v29 = vld [vmem:[%s2] sm:$0xff]
  %v30 = vld [vmem:[%s2 + $0x8] sm:$0x3f]
  %v31 = vld [vmem:[%s1] sm:$0xff]
  %v32 = vld [vmem:[%s3] sm:$0x3]
  %vm33 = vcmask 15360
  %v35 = vsel %vm33, %v31, 0
  %vm37 = vcmask 1041408
  %v39 = vsel %vm37, %v32, 0
  %41 = vmatprep.subr.mxu0 0.0
  %42 = vmatpush1.msra.mxu0 0.0
  %43 = vmatprep.subr.mxu0 0.0
  %44 = vmatpush1.msra.mxu0 0.0
  %45 = vmatprep.subr.mxu0 0.0
  %46 = vmatpush1.msra.mxu0 0.0
  %47 = vmatprep.subr.mxu0 0.0
  %48 = vmatpush1.msra.mxu0 0.0
  %49 = vmatprep.subr.mxu0 0.0
  %50 = vmatpush1.msra.mxu0 0.0
  %51 = vmatprep.subr.mxu0 0.0
  %52 = vmatpush1.msra.mxu0 0.0
  %53 = vmatprep.subr.mxu0 0.0
  %54 = vmatpush1.msra.mxu0 0.0
  %55 = vmatprep.subr.mxu0 0.0
  %56 = vmatpush1.msra.mxu0 0.0
  %57 = vmatprep.subr.mxu0 0.0
  %58 = vmatpush1.msra.mxu0 0.0
  %59 = vmatprep.subr.mxu0 0.0
  %60 = vmatpush1.msra.mxu0 0.0
  %61 = vmatprep.subr.mxu0 0.0
  %62 = vmatpush1.msra.mxu0 0.0
  %63 = vmatprep.subr.mxu0 0.0
  %64 = vmatpush1.msra.mxu0 0.0
  %65 = vmatprep.subr.mxu0 0.0
  %66 = vmatpush1.msra.mxu0 0.0
  %67 = vmatprep.subr.mxu0 0.0
  %68 = vmatpush1.msra.mxu0 0.0
  %69 = vmatprep.subr.mxu0 0.0
  %70 = vmatpush1.msra.mxu0 0.0
  %71 = vmatprep.subr.mxu0 0.0
  %72 = vmatpush1.msra.mxu0 %v39
  %73 = vmatprep.subr.mxu0 0.0
  %74 = vmatpush2.msra.mxu0 0.0
  %75 = vmatprep.subr.mxu0 0.0
  %76 = vmatpush2.msra.mxu0 0.0
  %77 = vmatprep.subr.mxu0 0.0
  %78 = vmatpush2.msra.mxu0 0.0
  %79 = vmatprep.subr.mxu0 0.0
  %80 = vmatpush2.msra.mxu0 0.0
  %81 = vmatprep.subr.mxu0 0.0
  %82 = vmatpush2.msra.mxu0 0.0
  %83 = vmatprep.subr.mxu0 0.0
  %84 = vmatpush2.msra.mxu0 0.0
  %85 = vmatprep.subr.mxu0 0.0
  %86 = vmatpush2.msra.mxu0 0.0
  %87 = vmatprep.subr.mxu0 0.0
  %88 = vmatpush2.msra.mxu0 0.0
  %89 = vmatprep.subr.mxu0 0.0
  %90 = vmatpush2.msra.mxu0 0.0
  %91 = vmatprep.subr.mxu0 0.0
  %92 = vmatpush2.msra.mxu0 0.0
  %93 = vmatprep.subr.mxu0 0.0
  %94 = vmatpush2.msra.mxu0 0.0
  %95 = vmatprep.subr.mxu0 0.0
  %96 = vmatpush2.msra.mxu0 0.0
  %97 = vmatprep.subr.mxu0 0.0
  %98 = vmatpush2.msra.mxu0 0.0
  %99 = vmatprep.subr.mxu0 0.0
  %100 = vmatpush2.msra.mxu0 0.0
  %101 = vmatprep.subr.mxu0 0.0
  %102 = vmatpush2.msra.mxu0 0.0
  %103 = vmatprep.subr.mxu0 0.0
  %104 = vmatpush2.msra.mxu0 0.0
  %105 = vmatprep.mubr.f32.mxu0 0.0
  %106 = vmatmul.mubr.f32.gmra.mxu0 %v35
  %v107 = vpop.f32.mrf.mxu0
  %v108 = vadd.f32 0.0, %v107
  %v109 = vpop.f32.mrf.mxu0
  %110 = vdwg.mxu0
  %vm111 = vcmask 113664
  %v113 = vsel %vm111, %v28, 0
  %vm115 = vcmask 1045504
  %v117 = vsel %vm115, %v30, 0
  %119 = vmatprep.subr.mxu0 0.0
  %120 = vmatpush1.msra.mxu0 0.0
  %121 = vmatprep.subr.mxu0 0.0
  %122 = vmatpush1.msra.mxu0 0.0
  %123 = vmatprep.subr.mxu0 0.0
  %124 = vmatpush1.msra.mxu0 0.0
  %125 = vmatprep.subr.mxu0 0.0
  %126 = vmatpush1.msra.mxu0 0.0
  %127 = vmatprep.subr.mxu0 0.0
  %128 = vmatpush1.msra.mxu0 0.0
  %129 = vmatprep.subr.mxu0 0.0
  %130 = vmatpush1.msra.mxu0 0.0
  %131 = vmatprep.subr.mxu0 0.0
  %132 = vmatpush1.msra.mxu0 0.0
  %133 = vmatprep.subr.mxu0 0.0
  %134 = vmatpush1.msra.mxu0 0.0
  %135 = vmatprep.subr.mxu0 0.0
  %136 = vmatpush1.msra.mxu0 0.0
  %137 = vmatprep.subr.mxu0 0.0
  %138 = vmatpush1.msra.mxu0 0.0
  %139 = vmatprep.subr.mxu0 0.0
  %140 = vmatpush1.msra.mxu0 0.0
  %141 = vmatprep.subr.mxu0 0.0
  %142 = vmatpush1.msra.mxu0 0.0
  %143 = vmatprep.subr.mxu0 0.0
  %144 = vmatpush1.msra.mxu0 0.0
  %145 = vmatprep.subr.mxu0 0.0
  %146 = vmatpush1.msra.mxu0 0.0
  %147 = vmatprep.subr.mxu0 0.0
  %148 = vmatpush1.msra.mxu0 %v117
  %149 = vmatprep.subr.mxu0 0.0
  %150 = vmatpush1.msra.mxu0 %v29
  %151 = vmatprep.subr.mxu0 0.0
  %152 = vmatpush2.msra.mxu0 0.0
  %153 = vmatprep.subr.mxu0 0.0
  %154 = vmatpush2.msra.mxu0 0.0
  %155 = vmatprep.subr.mxu0 0.0
  %156 = vmatpush2.msra.mxu0 0.0
  %157 = vmatprep.subr.mxu0 0.0
  %158 = vmatpush2.msra.mxu0 0.0
  %159 = vmatprep.subr.mxu0 0.0
  %160 = vmatpush2.msra.mxu0 0.0
  %161 = vmatprep.subr.mxu0 0.0
  %162 = vmatpush2.msra.mxu0 0.0
  %163 = vmatprep.subr.mxu0 0.0
  %164 = vmatpush2.msra.mxu0 0.0
  %165 = vmatprep.subr.mxu0 0.0
  %166 = vmatpush2.msra.mxu0 0.0
  %167 = vmatprep.subr.mxu0 0.0
  %168 = vmatpush2.msra.mxu0 0.0
  %169 = vmatprep.subr.mxu0 0.0
  %170 = vmatpush2.msra.mxu0 0.0
  %171 = vmatprep.subr.mxu0 0.0
  %172 = vmatpush2.msra.mxu0 0.0
  %173 = vmatprep.subr.mxu0 0.0
  %174 = vmatpush2.msra.mxu0 0.0
  %175 = vmatprep.subr.mxu0 0.0
  %176 = vmatpush2.msra.mxu0 0.0
  %177 = vmatprep.subr.mxu0 0.0
  %178 = vmatpush2.msra.mxu0 0.0
  %179 = vmatprep.subr.mxu0 0.0
  %180 = vmatpush2.msra.mxu0 0.0
  %181 = vmatprep.subr.mxu0 0.0
  %182 = vmatpush2.msra.mxu0 0.0
  %183 = vmatprep.mubr.f32.mxu0 0.0
  %184 = vmatmul.mubr.f32.gmra.mxu0 %v113
  %v185 = vpop.f32.mrf.mxu0
  %v186 = vadd.f32 %v108, %v185
  %v187 = vpop.f32.mrf.mxu0
  %188 = vdwg.mxu0
  %v189 = vld [vmem:[%s4] sm:$0x1]
  %v191 = vlaneseq
  %v192 = vshrl.u32 %v191, 7
  %v193 = vsub.s32 0, %v192
  %v194 = vrot.slane %v189, %v193
  %v196 = vadd.f32 %v186, %v194
  %v197 = vmax.f32 %v196, 0.0
  %v198 = vld [vmem:[%s5] sm:$0xff]
  %v199 = vld [vmem:[%s5 + $0x8] sm:$0xff]
  %v200 = vld [vmem:[%s5 + $0x10] sm:$0xff]
  %v201 = vld [vmem:[%s5 + $0x18] sm:$0xff]
  %v202 = vld [vmem:[%s5 + $0x20] sm:$0xff]
  %v203 = vld [vmem:[%s5 + $0x28] sm:$0xff]
  %v204 = vld [vmem:[%s5 + $0x30] sm:$0xff]
  %v205 = vld [vmem:[%s5 + $0x38] sm:$0xff]
  %v206 = vld [vmem:[%s5 + $0x40] sm:$0xff]
  %v207 = vld [vmem:[%s5 + $0x48] sm:$0xff]
  %v208 = vld [vmem:[%s5 + $0x50] sm:$0xff]
  %v209 = vld [vmem:[%s5 + $0x58] sm:$0xff]
  %v210 = vld [vmem:[%s5 + $0x60] sm:$0xff]
  %v211 = vld [vmem:[%s5 + $0x68] sm:$0xff]
  %v212 = vld [vmem:[%s5 + $0x70] sm:$0xff]
  %v213 = vld [vmem:[%s5 + $0x78] sm:$0xff]
  %v214 = vld [vmem:[#allocation2] sm:$0x1]
  %v216 = vlaneseq
  %v217 = vshrl.u32 %v216, 7
  %v218 = vsub.s32 0, %v217
  %v219 = vrot.slane %v214, %v218
  %221 = vmatprep.subr.mxu0 0.0
  %222 = vmatpush1.msra.mxu0 %v213
  %223 = vmatprep.subr.mxu0 0.0
  %224 = vmatpush1.msra.mxu0 %v212
  %225 = vmatprep.subr.mxu0 0.0
  %226 = vmatpush1.msra.mxu0 %v211
  %227 = vmatprep.subr.mxu0 0.0
  %228 = vmatpush1.msra.mxu0 %v210
  %229 = vmatprep.subr.mxu0 0.0
  %230 = vmatpush1.msra.mxu0 %v209
  %231 = vmatprep.subr.mxu0 0.0
  %232 = vmatpush1.msra.mxu0 %v208
  %233 = vmatprep.subr.mxu0 0.0
  %234 = vmatpush1.msra.mxu0 %v207
  %235 = vmatprep.subr.mxu0 0.0
  %236 = vmatpush1.msra.mxu0 %v206
  %237 = vmatprep.subr.mxu0 0.0
  %238 = vmatpush1.msra.mxu0 %v205
  %239 = vmatprep.subr.mxu0 0.0
  %240 = vmatpush1.msra.mxu0 %v204
  %241 = vmatprep.subr.mxu0 0.0
  %242 = vmatpush1.msra.mxu0 %v203
  %243 = vmatprep.subr.mxu0 0.0
  %244 = vmatpush1.msra.mxu0 %v202
  %245 = vmatprep.subr.mxu0 0.0
  %246 = vmatpush1.msra.mxu0 %v201
  %247 = vmatprep.subr.mxu0 0.0
  %248 = vmatpush1.msra.mxu0 %v200
  %249 = vmatprep.subr.mxu0 0.0
  %250 = vmatpush1.msra.mxu0 %v199
  %251 = vmatprep.subr.mxu0 0.0
  %252 = vmatpush1.msra.mxu0 %v198
  %253 = vmatprep.subr.mxu0 0.0
  %254 = vmatpush2.msra.mxu0 0.0
  %255 = vmatprep.subr.mxu0 0.0
  %256 = vmatpush2.msra.mxu0 0.0
  %257 = vmatprep.subr.mxu0 0.0
  %258 = vmatpush2.msra.mxu0 0.0
  %259 = vmatprep.subr.mxu0 0.0
  %260 = vmatpush2.msra.mxu0 0.0
  %261 = vmatprep.subr.mxu0 0.0
  %262 = vmatpush2.msra.mxu0 0.0
  %263 = vmatprep.subr.mxu0 0.0
  %264 = vmatpush2.msra.mxu0 0.0
  %265 = vmatprep.subr.mxu0 0.0
  %266 = vmatpush2.msra.mxu0 0.0
  %267 = vmatprep.subr.mxu0 0.0
  %268 = vmatpush2.msra.mxu0 0.0
  %269 = vmatprep.subr.mxu0 0.0
  %270 = vmatpush2.msra.mxu0 0.0
  %271 = vmatprep.subr.mxu0 0.0
  %272 = vmatpush2.msra.mxu0 0.0
  %273 = vmatprep.subr.mxu0 0.0
  %274 = vmatpush2.msra.mxu0 0.0
  %275 = vmatprep.subr.mxu0 0.0
  %276 = vmatpush2.msra.mxu0 0.0
  %277 = vmatprep.subr.mxu0 0.0
  %278 = vmatpush2.msra.mxu0 0.0
  %279 = vmatprep.subr.mxu0 0.0
  %280 = vmatpush2.msra.mxu0 0.0
  %281 = vmatprep.subr.mxu0 0.0
  %282 = vmatpush2.msra.mxu0 0.0
  %283 = vmatprep.subr.mxu0 0.0
  %284 = vmatpush2.msra.mxu0 0.0
  %285 = vmatprep.mubr.f32.mxu0 0.0
  %286 = vmatmul.mubr.f32.gmra.mxu0 %v197
  %v287 = vpop.f32.mrf.mxu0
  %v288 = vadd.f32 %v219, %v287
  %v289 = vpop.f32.mrf.mxu0
  %290 = vdwg.mxu0
  %vm291 = vcmask 7168
  %292 = vst.msk [vmem:[%s7] sm:$0xff] %vm291, %v288
  // Predicated region
  $region30: #{tpu_custom_call.1} parent=0 // pred_check
    _
  $region31: #{tpu_custom_call.1} parent=0 // pred_check_branch
    %294 = sbr.rel (0) target = $region33
  $region32: #{tpu_custom_call.1} parent=0 // pred_region
    _
  $region33: #{tpu_custom_call.1} parent=0 // pred_fallthru
    _
  // Predicated region
  $region34: #{tpu_custom_call.1} parent=0 // pred_check
    _
  $region35: #{tpu_custom_call.1} parent=0 // pred_check_branch
    %296 = sbr.rel (0) target = $region37
  $region36: #{tpu_custom_call.1} parent=0 // pred_region
    _
  $region37: #{tpu_custom_call.1} parent=0 // pred_fallthru
    _

</llo_original>
